<compile_context>
chip_gen: v7x
topology: tpu7x:2x2x1
jax: 0.10.0
libtpu: 0.0.40
codegen_flags: <defaults>
</compile_context>

<pallas_src>
import functools
import math

import jax
import jax.numpy as jnp
from jax.experimental import pallas as pl
from jax.experimental.pallas import tpu as pltpu


# ----------------------------------------------------------------------------
# In-kernel fp16 "fake quant": round f32 values to the nearest fp16-representable
# value (round-to-nearest-even), keeping f32 storage.  Matches torch .half()
# operand rounding used by fake_fp8_mm for values in the fp16 normal range.
# TODO(synk): fp16 overflow->inf and subnormal flushing are not modelled; they
# are outside this layer's operating range.
# ----------------------------------------------------------------------------
def _round_f32_to_f16_grid(x):
    bits = pltpu.bitcast(x, jnp.uint32)
    lsb = jnp.bitwise_and(jnp.right_shift(bits, jnp.uint32(13)), jnp.uint32(1))
    rounded = bits + jnp.uint32(0x0FFF) + lsb
    rounded = jnp.bitwise_and(rounded, jnp.uint32(0xFFFFE000))
    return pltpu.bitcast(rounded, jnp.float32)


# ----------------------------------------------------------------------------
# Kernel 1: 2:4 soft-threshold sparsification (SoftThreshold2to4)
# Weight is pre-reshaped so that each vreg column holds two 4-groups along the
# sublane dim (8 sublanes fully used).  threshold t = 2nd-smallest |w| in each
# group; out = fp16_grid( sign(w) * relu(|w| - t) * scale ).
# The fp16 rounding of the sparse weight is folded in here so the fused GEMM
# kernel never re-rounds these constants.
# ----------------------------------------------------------------------------
def _second_smallest_of_4(a4):               # a4: (4, G)
    a0, a1, a2, a3 = a4[0:1], a4[1:2], a4[2:3], a4[3:4]
    m_lo = jnp.minimum(a0, a1)
    m_hi = jnp.maximum(a0, a1)
    n_lo = jnp.minimum(a2, a3)
    n_hi = jnp.maximum(a2, a3)
    return jnp.minimum(jnp.maximum(m_lo, n_lo), jnp.minimum(m_hi, n_hi))


def _soft_threshold24_kernel(scale_ref, w_ref, o_ref):
    w = w_ref[...]                            # (8, Gb) or (4, Gb) float32
    a = jnp.abs(w)
    if w_ref.shape[0] == 8:                   # two 4-groups per column
        t_lo = _second_smallest_of_4(a[0:4])
        t_hi = _second_smallest_of_4(a[4:8])
        rows = jax.lax.broadcasted_iota(jnp.int32, a.shape, 0)
        t = jnp.where(rows < 4,
                      jnp.broadcast_to(t_lo, a.shape),
                      jnp.broadcast_to(t_hi, a.shape))
    else:                                     # fallback: one group per column
        t = jnp.broadcast_to(_second_smallest_of_4(a), a.shape)
    shr = jnp.maximum(a - t, 0.0)
    sparse = jnp.where(w >= 0.0, shr, -shr) * scale_ref[0]
    o_ref[...] = _round_f32_to_f16_grid(sparse)


def soft_threshold_2to4(w, scale, *, col_block=4096):
    """2:4 soft-threshold * scale, rounded to the fp16 grid (f32 storage)."""
    rows, cols = w.shape
    total = rows * cols
    assert total % 4 == 0
    pack = 8 if total % 8 == 0 else 4
    # TODO(synk): the pack/unpack transposes below are two small extra passes
    # over the (tiny) weight; a BlockSpec cannot express a transpose, so they
    # are kept in the wrapper.
    wp = w.reshape(-1, pack).T.astype(jnp.float32)       # (pack, G)
    g = wp.shape[1]
    tc = g if g <= col_block else col_block               # full dim or mult-of-128
    grid = (pl.cdiv(g, tc),)
    scale_arr = jnp.asarray(scale, dtype=jnp.float32).reshape(1)

    out = pl.pallas_call(
        _soft_threshold24_kernel,
        out_shape=jax.ShapeDtypeStruct(wp.shape, jnp.float32),
        grid_spec=pltpu.PrefetchScalarGridSpec(
            num_scalar_prefetch=0,
            grid=grid,
            in_specs=[
                pl.BlockSpec(memory_space=pltpu.MemorySpace.SMEM),   # scale
                pl.BlockSpec((pack, tc), lambda j: (0, j)),          # packed w
            ],
            out_specs=pl.BlockSpec((pack, tc), lambda j: (0, j)),
        ),
        compiler_params=pltpu.CompilerParams(
            dimension_semantics=("parallel",)),
    )(scale_arr, wp)
    return out.T.reshape(rows, cols)


# ----------------------------------------------------------------------------
# Kernel 2: fused low-rank sparse forward
#   proj[i] = sum_k fp16(x[i,k]) @ A_s[k]          (VMEM scratch accumulator)
#   out[i]  = fp16(proj[i]) @ B_s.T + bias         (epilogue at last K step)
# A_s / B_s arrive already rounded to the fp16 grid.
# ----------------------------------------------------------------------------
def _fused_lowrank_kernel(x_ref, a_ref, b_ref, bias_ref, o_ref, proj_ref, *,
                          round_x, k_valid, tk, precision):
    k = pl.program_id(1)

    @pl.when(k == 0)
    def _():
        proj_ref[...] = jnp.zeros_like(proj_ref)

    x = x_ref[...].astype(jnp.float32)
    if round_x:                                   # fp32 activations: fake-quant here
        x = _round_f32_to_f16_grid(x)
    if k_valid is not None:                       # ragged K tail: zero the OOB columns
        col = k * tk + jax.lax.broadcasted_iota(jnp.int32, x.shape, 1)
        x = jnp.where(col < k_valid, x, 0.0)

    proj_ref[...] += jnp.dot(x, a_ref[...],
                             preferred_element_type=jnp.float32,
                             precision=precision)

    @pl.when(k == pl.num_programs(1) - 1)
    def _():
        pq = _round_f32_to_f16_grid(proj_ref[...])
        out = jnp.dot(pq, b_ref[...],               # (tm, R) @ (R, N)
                      preferred_element_type=jnp.float32,
                      precision=precision)
        o_ref[...] = out + bias_ref[...]


def _round_up(v, m):
    return (v + m - 1) // m * m


def _pick_tm(M, tm_target):
    if M <= 8:
        return M
    tm = min(tm_target, _round_up(M, 8))
    # Ensure >=2 M tiles so the "parallel" axis shards across both TensorCores
    # on v7x (harmless one extra grid step on v5e/v6e).
    if pl.cdiv(M, tm) < 2:
        tm = max(8, _round_up(pl.cdiv(M, 2), 8))
    return tm


def _pick_tk(K, tk_target):
    if K <= tk_target:
        return K                                   # full dim: always a legal block
    if K % 128 == 0:
        best, d = 0, 128
        while d <= tk_target:
            if K % d == 0:
                best = d
            d += 128
        if best >= 256:
            return best
    # Ragged (or only tiny divisors): use the full target and mask the tail.
    return tk_target


def _select_tiling(M, K, N, R, x_itemsize):
    try:
        vmem_cap = int(pltpu.get_tpu_info().vmem_capacity_bytes)
    except Exception:
        vmem_cap = 64 * 1024 * 1024                # v7x per-TC capacity (conservative)
    budget = int(vmem_cap * 0.7)

    def footprint(tm, tk):
        lane = lambda n: _round_up(max(n, 1), 128)
        sub = lambda n: _round_up(max(n, 1), 8)
        return (2 * sub(tm) * lane(tk) * x_itemsize     # x tile (double-buffered)
                + 2 * sub(tk) * lane(R) * 4             # A_s tile (double-buffered)
                + 2 * sub(R) * lane(N) * 4              # B_s^T resident (2 bufs)
                + 2 * 8 * lane(N) * 4                   # bias
                + 2 * sub(tm) * lane(N) * 4             # out tile (double-buffered)
                + sub(tm) * lane(R) * 4)                # proj scratch

    tm_target, tk_target = 512, 1024                    # big tiles on 128 MiB parts
    while True:
        tm = _pick_tm(M, tm_target)
        tk = _pick_tk(K, tk_target)
        if footprint(tm, tk) <= budget or (tm_target <= 64 and tk_target <= 256):
            break
        if tk_target > 256:
            tk_target //= 2
        else:
            tm_target //= 2                              # shrink tm when (tm,N) out
                                                         # double-buffer dominates
    vmem_limit = min(max(int(footprint(tm, tk) * 1.3) + (4 << 20), 32 << 20),
                     vmem_cap)
    return tm, tk, vmem_limit


def fused_lowrank_sparse_matmul(x2, a_s, b_t, bias, *, round_x):
    """out = fp16(q(x2) @ a_s) @ b_t + bias   (fp32 accumulation).

    x2:  (M, K) in fp32 (rounded in-kernel when round_x) or bf16/fp16 (streamed).
    a_s: (K, R) fp16-gridded sparse A.
    b_t: (R, N) fp16-gridded sparse B, pre-transposed (lane-dense resident buffer).
    """
    M, K = x2.shape
    R, N = b_t.shape
    Ka, Ra = a_s.shape
    assert Ka == K and Ra == R and bias.shape == (N,)

    x_itemsize = jnp.dtype(x2.dtype).itemsize
    tm, tk, vmem_limit = _select_tiling(M, K, N, R, x_itemsize)

    grid_m = pl.cdiv(M, tm)
    grid_k = pl.cdiv(K, tk)
    k_pad = grid_k * tk
    if k_pad != K:
        # Only the tiny A_s is padded; x keeps its natural shape (tail masked
        # in-kernel, OOB output rows simply dropped by Pallas).
        a_s = jnp.pad(a_s, ((0, k_pad - K), (0, 0)))
        k_valid = K
    else:
        k_valid = None

    cost = pl.CostEstimate(
        flops=2 * M * K * R + 2 * M * R * N,
        transcendentals=0,
        bytes_accessed=(M * K * x_itemsize + grid_m * k_pad * R * 4
                        + R * N * 4 + 4 * N + M * N * 4))

    def run(precision):
        return pl.pallas_call(
            functools.partial(_fused_lowrank_kernel, round_x=round_x,
                              k_valid=k_valid, tk=tk, precision=precision),
            out_shape=jax.ShapeDtypeStruct((M, N), jnp.float32),
            grid_spec=pltpu.PrefetchScalarGridSpec(
                num_scalar_prefetch=0,
                grid=(grid_m, grid_k),
                in_specs=[
                    pl.BlockSpec((tm, tk), lambda i, k: (i, k)),   # x tile
                    pl.BlockSpec((tk, R), lambda i, k: (k, 0)),    # A_s tile
                    # TODO(synk): pipeline_mode=pl.Buffered(1) would drop the
                    # pointless second buffer for the two constant-index blocks.
                    pl.BlockSpec((R, N), lambda i, k: (0, 0)),     # B_s^T resident
                    pl.BlockSpec((1, N), lambda i, k: (0, 0)),     # bias
                ],
                out_specs=pl.BlockSpec((tm, N), lambda i, k: (i, 0)),
                scratch_shapes=[pltpu.VMEM((tm, R), jnp.float32)],
            ),
            compiler_params=pltpu.CompilerParams(
                dimension_semantics=("parallel", "arbitrary"),
                vmem_limit_bytes=vmem_limit),
            cost_estimate=cost,
        )(x2, a_s, b_t, bias.reshape(1, N))

    try:
        return run(jax.lax.Precision.HIGHEST)      # full-precision f32 MXU passes
    except Exception:
        # TODO(synk): some Mosaic lowerings reject an explicit matmul precision;
        # fall back to the (previously validated) default-precision path.
        return run(None)


# ----------------------------------------------------------------------------
# Forward pass of LowRankSparse2to4Linear (enable_sparse=True path)
# ----------------------------------------------------------------------------
def lowrank_sparse24_forward(x, weight_A, weight_B, bias=None,
                             scale_A=1.0, scale_B=1.0):
    in_features, rank = weight_A.shape
    out_features, rank_b = weight_B.shape
    assert rank == rank_b and x.shape[-1] == in_features

    a_s = soft_threshold_2to4(weight_A, scale_A)      # (K, R), fp16-grid values
    b_s = soft_threshold_2to4(weight_B, scale_B)      # (N, R), fp16-grid values
    b_t = b_s.T                                       # (R, N): lane-dense layout

    if bias is None:
        bias = jnp.zeros((out_features,), jnp.float32)

    lead = x.shape[:-1]
    m = 1
    for d in lead:
        m *= int(d)
    x2 = x.reshape(m, in_features)
    if x2.dtype in (jnp.float16, jnp.bfloat16):
        round_x = False     # 16-bit activations: loading them IS the fake quant
    else:
        x2 = x2.astype(jnp.float32)
        round_x = True      # fp32 activations: fp16-grid rounding inside the kernel

    out = fused_lowrank_sparse_matmul(x2, a_s, b_t, bias.astype(jnp.float32),
                                      round_x=round_x)
    return out.reshape(*lead, out_features)


# ----------------------------------------------------------------------------
if __name__ == "__main__":
    batch, seq = 2, 8
    in_features, out_features, rank = 32, 32, 8

    key = jax.random.PRNGKey(0)
    k1, k2, k3 = jax.random.split(key, 3)

    # Deterministic xavier-normal-style init (matches module __init__ shapes).
    std_A = math.sqrt(2.0 / (in_features + rank))
    std_B = math.sqrt(2.0 / (out_features + rank))
    weight_A = std_A * jax.random.normal(k1, (in_features, rank), jnp.float32)
    weight_B = std_B * jax.random.normal(k2, (out_features, rank), jnp.float32)
    bias = jnp.zeros((out_features,), jnp.float32)      # nn.Parameter(zeros)
    scale_A = 1.0                                       # sparse_init_scale
    scale_B = 1.0

    x = jax.random.normal(k3, (batch, seq, in_features), jnp.float32)

    # --- fp32-activation path (fake quant to the fp16 grid inside the kernel) ---
    out = lowrank_sparse24_forward(x, weight_A, weight_B, bias, scale_A, scale_B)
    out = jax.block_until_ready(out)
    assert out.shape == (batch, seq, out_features)
    assert out.dtype == jnp.float32

    # Plain-JAX reference (fp16 operand rounding, fp32 accumulation).
    def ref_soft24(w, s):
        g = w.reshape(-1, 4)
        a = jnp.abs(g)
        t = jnp.sort(a, axis=-1)[:, 1:2]
        shr = jnp.maximum(a - t, 0.0)
        return (jnp.where(g >= 0, shr, -shr) * s).reshape(w.shape)

    q = lambda t: t.astype(jnp.float16).astype(jnp.float32)
    hi = jax.lax.Precision.HIGHEST
    A_r = ref_soft24(weight_A, scale_A)
    B_r = ref_soft24(weight_B, scale_B)
    proj_r = jnp.dot(q(x.reshape(-1, in_features)), q(A_r), precision=hi)
    out_r = (jnp.dot(q(proj_r), q(B_r).T, precision=hi) + bias).reshape(
        batch, seq, out_features)
    err = float(jnp.max(jnp.abs(out - out_r)))
    assert jnp.allclose(out, out_r, atol=2e-3, rtol=2e-3), err

    # --- 16-bit-activation path (x streamed directly, no in-kernel rounding) ---
    x_bf = x.astype(jnp.bfloat16)
    out_bf = lowrank_sparse24_forward(x_bf, weight_A, weight_B, bias,
                                      scale_A, scale_B)
    out_bf = jax.block_until_ready(out_bf)
    assert out_bf.shape == (batch, seq, out_features)
    x_bf_r = x_bf.astype(jnp.float32).reshape(-1, in_features)  # bf16->fp16 exact in range
    proj_bf_r = jnp.dot(x_bf_r, q(A_r), precision=hi)
    out_bf_r = (jnp.dot(q(proj_bf_r), q(B_r).T, precision=hi) + bias).reshape(
        batch, seq, out_features)
    err_bf = float(jnp.max(jnp.abs(out_bf - out_bf_r)))
    assert jnp.allclose(out_bf, out_bf_r, atol=2e-3, rtol=2e-3), err_bf

    print("KERNEL_OK")
</pallas_src>

<mosaic_0001>
module attributes {stable_mosaic.version = 11 : i64} {
  func.func @_soft_threshold24_kernel(%arg0: i32, %arg1: memref<1xf32, #tpu.memory_space<smem>>, %arg2: memref<8x32xf32, #tpu.memory_space<vmem>>, %arg3: memref<8x32xf32, #tpu.memory_space<vmem>>) attributes {dimension_semantics = [#tpu.dimension_semantics<parallel>], iteration_bounds = array<i64: 1>, scalar_prefetch = 0 : i64, scratch_operands = 0 : i64, tpu.core_type = #tpu.core_type<tc>, window_params = [{transform_indices = @transform_0, window_bounds = array<i64: 1>}, {transform_indices = @transform_1, window_bounds = array<i64: 8, 32>}, {transform_indices = @transform_2, window_bounds = array<i64: 8, 32>}]} {
    %c0 = arith.constant 0 : index
    %c0_0 = arith.constant 0 : index
    %0 = vector.load %arg2[%c0, %c0_0] : memref<8x32xf32, #tpu.memory_space<vmem>>, vector<8x32xf32>
    %1 = math.absf %0 : vector<8x32xf32>
    %2 = vector.extract_strided_slice %1 {offsets = [0, 0], sizes = [4, 32], strides = [1, 1]} : vector<8x32xf32> to vector<4x32xf32>
    %3 = vector.extract_strided_slice %2 {offsets = [0, 0], sizes = [1, 32], strides = [1, 1]} : vector<4x32xf32> to vector<1x32xf32>
    %4 = vector.extract_strided_slice %2 {offsets = [1, 0], sizes = [1, 32], strides = [1, 1]} : vector<4x32xf32> to vector<1x32xf32>
    %5 = vector.extract_strided_slice %2 {offsets = [2, 0], sizes = [1, 32], strides = [1, 1]} : vector<4x32xf32> to vector<1x32xf32>
    %6 = vector.extract_strided_slice %2 {offsets = [3, 0], sizes = [1, 32], strides = [1, 1]} : vector<4x32xf32> to vector<1x32xf32>
    %7 = arith.minimumf %3, %4 : vector<1x32xf32>
    %8 = arith.maximumf %3, %4 : vector<1x32xf32>
    %9 = arith.minimumf %5, %6 : vector<1x32xf32>
    %10 = arith.maximumf %5, %6 : vector<1x32xf32>
    %11 = arith.maximumf %7, %9 : vector<1x32xf32>
    %12 = arith.minimumf %8, %10 : vector<1x32xf32>
    %13 = arith.minimumf %11, %12 : vector<1x32xf32>
    %14 = vector.extract_strided_slice %1 {offsets = [4, 0], sizes = [4, 32], strides = [1, 1]} : vector<8x32xf32> to vector<4x32xf32>
    %15 = vector.extract_strided_slice %14 {offsets = [0, 0], sizes = [1, 32], strides = [1, 1]} : vector<4x32xf32> to vector<1x32xf32>
    %16 = vector.extract_strided_slice %14 {offsets = [1, 0], sizes = [1, 32], strides = [1, 1]} : vector<4x32xf32> to vector<1x32xf32>
    %17 = vector.extract_strided_slice %14 {offsets = [2, 0], sizes = [1, 32], strides = [1, 1]} : vector<4x32xf32> to vector<1x32xf32>
    %18 = vector.extract_strided_slice %14 {offsets = [3, 0], sizes = [1, 32], strides = [1, 1]} : vector<4x32xf32> to vector<1x32xf32>
    %19 = arith.minimumf %15, %16 : vector<1x32xf32>
    %20 = arith.maximumf %15, %16 : vector<1x32xf32>
    %21 = arith.minimumf %17, %18 : vector<1x32xf32>
    %22 = arith.maximumf %17, %18 : vector<1x32xf32>
    %23 = arith.maximumf %19, %21 : vector<1x32xf32>
    %24 = arith.minimumf %20, %22 : vector<1x32xf32>
    %25 = arith.minimumf %23, %24 : vector<1x32xf32>
    %26 = tpu.iota {dimensions = array<i32: 0>} : vector<8x32xi32>
    %c4_i32 = arith.constant 4 : i32
    %27 = vector.broadcast %c4_i32 : i32 to vector<8x32xi32>
    %28 = arith.cmpi slt, %26, %27 : vector<8x32xi32>
    %29 = vector.shape_cast %13 : vector<1x32xf32> to vector<1x32xf32>
    %30 = vector.broadcast %29 : vector<1x32xf32> to vector<8x32xf32>
    %31 = vector.shape_cast %25 : vector<1x32xf32> to vector<1x32xf32>
    %32 = vector.broadcast %31 : vector<1x32xf32> to vector<8x32xf32>
    %33 = arith.select %28, %30, %32 : vector<8x32xi1>, vector<8x32xf32>
    %34 = arith.subf %1, %33 : vector<8x32xf32>
    %cst = arith.constant 0.000000e+00 : f32
    %35 = vector.broadcast %cst : f32 to vector<8x32xf32>
    %36 = arith.maximumf %34, %35 : vector<8x32xf32>
    %cst_1 = arith.constant 0.000000e+00 : f32
    %37 = vector.broadcast %cst_1 : f32 to vector<8x32xf32>
    %38 = arith.cmpf oge, %0, %37 : vector<8x32xf32>
    %cst_2 = arith.constant 0.000000e+00 : f32
    %39 = vector.broadcast %cst_2 : f32 to vector<8x32xf32>
    %40 = arith.subf %39, %36 : vector<8x32xf32>
    %41 = arith.select %38, %36, %40 : vector<8x32xi1>, vector<8x32xf32>
    %c0_3 = arith.constant 0 : index
    %42 = memref.load %arg1[%c0_3] : memref<1xf32, #tpu.memory_space<smem>>
    %43 = vector.broadcast %42 : f32 to vector<8x32xf32>
    %44 = arith.mulf %41, %43 : vector<8x32xf32>
    %45 = tpu.bitcast %44 : vector<8x32xf32> -> vector<8x32xi32>
    %c13_i32 = arith.constant 13 : i32
    %46 = vector.broadcast %c13_i32 : i32 to vector<8x32xi32>
    %47 = arith.shrui %45, %46 : vector<8x32xi32>
    %c1_i32 = arith.constant 1 : i32
    %48 = vector.broadcast %c1_i32 : i32 to vector<8x32xi32>
    %49 = arith.andi %47, %48 : vector<8x32xi32>
    %c4095_i32 = arith.constant 4095 : i32
    %50 = vector.broadcast %c4095_i32 : i32 to vector<8x32xi32>
    %51 = arith.addi %45, %50 : vector<8x32xi32>
    %52 = arith.addi %51, %49 : vector<8x32xi32>
    %c-8192_i32 = arith.constant -8192 : i32
    %53 = vector.broadcast %c-8192_i32 : i32 to vector<8x32xi32>
    %54 = arith.andi %52, %53 : vector<8x32xi32>
    %55 = tpu.bitcast %54 : vector<8x32xi32> -> vector<8x32xf32>
    %c0_4 = arith.constant 0 : index
    %c0_5 = arith.constant 0 : index
    %56 = vector.load %arg3[%c0_4, %c0_5] : memref<8x32xf32, #tpu.memory_space<vmem>>, vector<8x32xf32>
    tpu.vector_store %arg3[%c0_4, %c0_5], %55 {strides = array<i32>} : memref<8x32xf32, #tpu.memory_space<vmem>>, vector<8x32xf32>,
    return
  }
  func.func @transform_0(%arg0: i32) -> i32 {
    %c0_i32 = arith.constant 0 : i32
    %c0_i32_0 = arith.constant 0 : i32
    return %c0_i32 : i32
  }
  func.func @transform_1(%arg0: i32) -> (i32, i32) {
    %c0_i32 = arith.constant 0 : i32
    %c0_i32_0 = arith.constant 0 : i32
    return %c0_i32, %arg0 : i32, i32
  }
  func.func @transform_2(%arg0: i32) -> (i32, i32) {
    %c0_i32 = arith.constant 0 : i32
    %c0_i32_0 = arith.constant 0 : i32
    return %c0_i32, %arg0 : i32, i32
  }
}

</mosaic_0001>

<llo_original>
// kernel: tpu_custom_call.1
$region0: #{tpu_custom_call.1}
  #allocation0 [shape = 'u32[]', space=smem, size = 0x4, offset = 0x4, fixed_abs, tag = 'smem constant byte address 0x4 - core index']
  #allocation1 [shape = 'u32[144,128]{1,0:T(1,128)}', space=vmem, size = 0x12000, scoped, tag = 'internal scratch']
  #allocation2 [shape = 'f32[1]{0:T(128)S(6)}', space=smem, size = 0x200, scoped, tag = 'scoped memory for tpu_custom_call.1']
  %s0 = inlined_call_operand.<no memory space> [shape: f32[1], index: 0, kind: input, shape index: {}]
  %s1 = inlined_call_operand.hbm [shape: f32[8,32], index: 1, kind: input, shape index: {}]
  %s2 = inlined_call_operand.hbm [shape: f32[8,32], index: 2, kind: output, shape index: {}]
  %s3 = sld [smem:[#allocation0]]
  $region22: #{tpu_custom_call.1} parent=0
    _
  %s5 = ssub.s32 1, %s3
  %s6 = scalar_select 0, %s5, %s3
  %7 = sst [smem:[#allocation2]] %s0
  $region1: #{tpu_custom_call.1} parent=0
    #allocation3 [shape = 'u8[4096]{0}', space=vmem, size = 0x1000, scoped, tag = 'input window, operand 1, single buffered']
    #allocation4 [shape = 's32[1]{0}', space=sflag, size = 0x4, scoped, tag = 'scoped memory for tpu_custom_call.1']
    #allocation5 [shape = 's32[1]{0}', space=sflag, size = 0x4, scoped, tag = 'scoped memory for tpu_custom_call.1']
    #allocation6 [shape = 'u8[4096]{0}', space=vmem, size = 0x1000, scoped, tag = 'output window, operand 0, single buffered']
    %8 = vsyncpa [#allocation4], 0
    %9 = vsyncpa [#allocation5], 0
    // Predicated region
    $region2: #{tpu_custom_call.1} parent=1 // pred_check
      _
    $region3: #{tpu_custom_call.1} parent=1 // pred_check_branch
      %11 = sbr.rel (0) target = $region5
    $region4: #{tpu_custom_call.1} parent=1 // pred_region
      _
    $region5: #{tpu_custom_call.1} parent=1 // pred_fallthru
      _
    // Predicated region
    $region6: #{tpu_custom_call.1} parent=1 // pred_check
      _
    $region7: #{tpu_custom_call.1} parent=1 // pred_check_branch
      %13 = sbr.rel (0) target = $region9
    $region8: #{tpu_custom_call.1} parent=1 // pred_region
      %s15 = ssub.s32 128, 128
      %16 = vsyncadd [#allocation4], %s15
      %s18 = sshll.u32 [#allocation3], 4
      %s19 = int_to_ptr.vmem [resolvable:$true] %s18
      %21 = dma.hbm_to_vmem [thread:$0]  %s1, 128, %s19, [#allocation4]
    $region9: #{tpu_custom_call.1} parent=1 // pred_fallthru
      _
    // Predicated region
    $region10: #{tpu_custom_call.1} parent=1 // pred_check
      _
    $region11: #{tpu_custom_call.1} parent=1 // pred_check_branch
      %23 = sbr.rel (0) target = $region13
    $region12: #{tpu_custom_call.1} parent=1 // pred_region
      %24 = dma.done [#allocation4], 128
    $region13: #{tpu_custom_call.1} parent=1 // pred_fallthru
      _
    %v25 = vld [vmem:[#allocation3] sm:$0xff]
    %v26 = vand.u32 2147483647, %v25
    %v28 = vrot.slane %v26, 1
    %v30 = vmin.f32 %v26, %v28
    %v31 = vmax.f32 %v26, %v28
    %v33 = vrot.slane %v30, 2
    %v35 = vmax.f32 %v30, %v33
    %v37 = vrot.slane %v31, 2
    %v39 = vmin.f32 %v31, %v37
    %v40 = vmin.f32 %v35, %v39
    %v41 = vlaneseq
    %v42 = vshrl.u32 %v41, 7
    %vm43 = vcmp.lt.s32.totalorder %v42, 4
    %v44 = vlaneseq
    %v45 = vshrl.u32 %v44, 7
    %v46 = vsub.s32 0, %v45
    %v47 = vrot.slane %v40, %v46
    %v48 = vlaneseq
    %v49 = vshrl.u32 %v48, 7
    %v50 = vsub.s32 4, %v49
    %v51 = vrot.slane %v40, %v50
    %v52 = vsel %vm43, %v47, %v51
    %v53 = vsub.f32 %v26, %v52
    %v54 = vmax.f32 %v53, 0.0
    %vm55 = vcmp.ge.f32.partialorder %v25, 0.0
    %v56 = vsub.f32 0.0, %v54
    %v57 = vsel %vm55, %v54, %v56
    %s58 = sld [smem:[#allocation2]]
    %v59 = vstv %s58
    %v60 = vmul.f32 %v57, %v59
    %v62 = vshrl.u32 %v60, 13
    %v63 = vand.u32 %v62, 1
    %v64 = vadd.s32 %v60, 4095
    %v65 = vadd.s32 %v64, %v63
    %v66 = vand.u32 %v65, 4294959104
    %vm68 = vcmask 261120
    %69 = vst.msk [vmem:[#allocation6] sm:$0xff] %vm68, %v66
    // Predicated region
    $region14: #{tpu_custom_call.1} parent=1 // pred_check
      _
    $region15: #{tpu_custom_call.1} parent=1 // pred_check_branch
      %71 = sbr.rel (0) target = $region17
    $region16: #{tpu_custom_call.1} parent=1 // pred_region
      %s73 = ssub.s32 128, 128
      %74 = vsyncadd [#allocation5], %s73
      %s76 = sshll.u32 [#allocation6], 4
      %s77 = int_to_ptr.vmem [resolvable:$true] %s76
      %79 = dma.vmem_to_hbm [thread:$0]  %s77, 128, %s2, [#allocation5]
    $region17: #{tpu_custom_call.1} parent=1 // pred_fallthru
      _
    // Predicated region
    $region18: #{tpu_custom_call.1} parent=1 // pred_check
      _
    $region19: #{tpu_custom_call.1} parent=1 // pred_check_branch
      %81 = sbr.rel (0) target = $region21
    $region20: #{tpu_custom_call.1} parent=1 // pred_region
      %82 = dma.done [#allocation5], 128
    $region21: #{tpu_custom_call.1} parent=1 // pred_fallthru
      _
    %83 = vsyncpa [#allocation4], 1
    %84 = vsyncpa [#allocation5], 1

</llo_original>
